<compile_context>
chip_gen: v7x
topology: tpu7x:2x2x1
jax: 0.10.0
libtpu: 0.0.40
codegen_flags: <defaults>
</compile_context>

<pallas_src>
import jax
import jax.numpy as jnp
from jax.experimental import pallas as pl
from jax.experimental.pallas import tpu as pltpu


def _round_up(n, m):
    return ((n + m - 1) // m) * m


def _tensorcores_per_chip():
    """Best-effort detection of TensorCores per chip (2 on v7x, else 1)."""
    try:
        kind = jax.devices()[0].device_kind.lower()
        if "v7" in kind or "7x" in kind:
            return 2
    except Exception:
        pass
    return 1


def _ln_relu_t(h, gamma, beta, eps=1e-5):
    """LayerNorm over the FEATURE axis (axis 0 in the transposed layout) + ReLU.

    Single-pass statistics (sum / sum-of-squares), f32 math, PyTorch nn.LayerNorm
    semantics (biased variance, eps inside the sqrt).
      h     : (features, tb)
      gamma : (features, 1)
      beta  : (features, 1)
    """
    n = h.shape[0]
    inv_n = 1.0 / n
    s1 = jnp.sum(h, axis=0, keepdims=True)            # (1, tb)
    s2 = jnp.sum(h * h, axis=0, keepdims=True)        # (1, tb)
    mu = s1 * inv_n
    var = jnp.maximum(s2 * inv_n - mu * mu, 0.0)       # clamp: avoid tiny negatives
    hn = (h - mu) * jax.lax.rsqrt(var + eps)
    return jnp.maximum(hn * gamma + beta, 0.0)


def critic_kernel(xt_ref,
                  w1_ref, b1_ref, g1_ref, be1_ref,
                  w2_ref, b2_ref, g2_ref, be2_ref,
                  wq_ref, bq_ref,
                  out_ref):
    """Fused forward in feature-major layout.

    xt_ref : (din, tb)   batch on lanes
    w*_ref : (out, in)   PyTorch weight layout -> W @ x^T on the MXU
    b/g/be : (out, 1)
    wq_ref : (h2, 1), bq_ref : (1, 1)
    out    : (1, tb)     lane-dense row of Q values
    """
    mxu_dtype = w1_ref.dtype  # bf16 (fast path) or f32 (exact path)

    # Layer 1: (h1, din) @ (din, tb) -> (h1, tb), f32 accumulation.
    xt = xt_ref[...].astype(mxu_dtype)
    h = jnp.dot(w1_ref[...], xt, preferred_element_type=jnp.float32) + b1_ref[...]
    h = _ln_relu_t(h, g1_ref[...], be1_ref[...])

    # Layer 2: (h2, h1) @ (h1, tb) -> (h2, tb).
    h = jnp.dot(w2_ref[...], h.astype(mxu_dtype),
                preferred_element_type=jnp.float32) + b2_ref[...]
    h = _ln_relu_t(h, g2_ref[...], be2_ref[...])

    # Q head: 1-wide output -> f32 multiply + sublane reduction (features axis),
    # producing a lane-dense (1, tb) row.
    q = jnp.sum(h * wq_ref[...], axis=0, keepdims=True) + bq_ref[...]
    out_ref[...] = q.astype(out_ref.dtype)


def critic_forward(x, params, *, tb=2048, use_bf16=True):
    """x: (B, state_size + action_size) float32 -> (B, 1) float32."""
    B, din = x.shape
    (w1, b1, g1, be1, w2, b2, g2, be2, wq, bq) = params
    h1 = w1.shape[0]
    h2 = w2.shape[0]

    # --- tile selection --------------------------------------------------------
    # Single full-array tile (no padding, no extra grid steps) unless the batch is
    # large; only v7x (2 TensorCores) gets a forced >=2-way, load-balanced split.
    n_tc = _tensorcores_per_chip()
    ntiles = max(pl.cdiv(B, max(tb, 128)), 1)
    if n_tc > 1 and B >= 256:
        ntiles = _round_up(max(ntiles, n_tc), n_tc)   # even #tiles, both TCs busy

    if ntiles == 1:
        tb_eff = B                  # full-array block: no padding needed at all
        B_pad = B
    else:
        tb_eff = _round_up(pl.cdiv(B, ntiles), 128)   # balanced, lane-aligned tiles
        B_pad = tb_eff * ntiles

    # --- feature-major input (batch on lanes) ----------------------------------
    xt = x.T                                          # (din, B) — tiny copy
    if B_pad != B:
        xt = jnp.pad(xt, ((0, 0), (0, B_pad - B)))    # zero cols flow safely thru LN

    # --- MXU dtype --------------------------------------------------------------
    mxu_dtype = jnp.bfloat16 if use_bf16 else jnp.float32
    w1_k = w1.astype(mxu_dtype)
    w2_k = w2.astype(mxu_dtype)

    def full(shape):
        # whole-array block, constant index -> resident across all grid steps
        return pl.BlockSpec(shape, lambda i: (0,) * len(shape))

    grid = (B_pad // tb_eff,)

    # Advisory cost estimate so XLA can overlap this call with surrounding work.
    flops = int(2 * B_pad * (din * h1 + h1 * h2 + h2) + 8 * B_pad * (h1 + h2))
    bytes_accessed = int(
        xt.size * xt.dtype.itemsize
        + w1_k.size * w1_k.dtype.itemsize + w2_k.size * w2_k.dtype.itemsize
        + sum(a.size * a.dtype.itemsize for a in (b1, g1, be1, b2, g2, be2, wq, bq))
        + B_pad * 4)
    cost = pl.CostEstimate(flops=flops, transcendentals=int(2 * B_pad),
                           bytes_accessed=bytes_accessed)

    out = pl.pallas_call(
        critic_kernel,
        out_shape=jax.ShapeDtypeStruct((1, B_pad), jnp.float32),
        grid_spec=pltpu.PrefetchScalarGridSpec(
            num_scalar_prefetch=0,
            grid=grid,
            in_specs=[
                pl.BlockSpec((din, tb_eff), lambda i: (0, i)),   # x^T tiled over batch
                full((h1, din)), full((h1, 1)), full((h1, 1)), full((h1, 1)),
                full((h2, h1)), full((h2, 1)), full((h2, 1)), full((h2, 1)),
                full((h2, 1)),                                   # wq as a column
                full((1, 1)),
            ],
            out_specs=pl.BlockSpec((1, tb_eff), lambda i: (0, i)),
        ),
        compiler_params=pltpu.CompilerParams(
            dimension_semantics=("parallel",)),
        cost_estimate=cost,
    )(xt, w1_k, b1, g1, be1, w2_k, b2, g2, be2, wq, bq)

    return out[0, :B][:, None]


def init_params(key, state_size, action_size, layers):
    """Deterministic init mirroring Critic.reset_parameters():
       kaiming_normal(fan_out, relu) weights, bias=0.1, LayerNorm gamma=1 beta=0,
       q head: PyTorch default uniform(-1/sqrt(fan_in), 1/sqrt(fan_in)).
       Weights stored in PyTorch's (out, in) layout; biases/LN params as (out, 1)."""
    dims = [state_size + action_size] + list(layers)
    params = []
    ks = jax.random.split(key, len(layers) + 2)
    for i in range(len(layers)):
        fan_in, fan_out = dims[i], dims[i + 1]
        std = (2.0 / fan_out) ** 0.5          # kaiming_normal_, mode='fan_out', relu
        w = jax.random.normal(ks[i], (fan_out, fan_in), jnp.float32) * std
        b = jnp.full((fan_out, 1), 0.1, jnp.float32)
        gamma = jnp.ones((fan_out, 1), jnp.float32)
        beta = jnp.zeros((fan_out, 1), jnp.float32)
        params += [w, b, gamma, beta]
    # q head: wq stored as (h_last, 1) column (kernel does mul + sublane reduce)
    fan_in = dims[-1]
    bound = 1.0 / (fan_in ** 0.5)
    wq = jax.random.uniform(ks[-2], (fan_in, 1), jnp.float32, -bound, bound)
    bq = jax.random.uniform(ks[-1], (1, 1), jnp.float32, -bound, bound)
    params += [wq, bq]
    return tuple(params)


def critic_forward_ref(x, params):
    """Pure-JAX f32 reference (row-major, two-pass LayerNorm) for correctness."""
    (w1, b1, g1, be1, w2, b2, g2, be2, wq, bq) = params

    def ln_relu(h, g, b, eps=1e-5):
        mu = jnp.mean(h, axis=-1, keepdims=True)
        var = jnp.mean(jnp.square(h - mu), axis=-1, keepdims=True)
        return jnp.maximum((h - mu) * jax.lax.rsqrt(var + eps) * g + b, 0.0)

    h = x @ w1.T + b1[:, 0]
    h = ln_relu(h, g1[:, 0], be1[:, 0])
    h = h @ w2.T + b2[:, 0]
    h = ln_relu(h, g2[:, 0], be2[:, 0])
    return h @ wq + bq[0]


if __name__ == "__main__":
    state_size, action_size = 16, 8
    layers = (64, 64)       # hidden layer sizes

    key = jax.random.PRNGKey(0)
    kx, kp = jax.random.split(key)
    params = init_params(kp, state_size, action_size, layers)

    # --- small ragged batch: single full-array tile, zero padding -------------------
    x_small = jax.random.normal(kx, (12, state_size + action_size), jnp.float32)
    q_ref = critic_forward_ref(x_small, params)

    q_f32 = jax.block_until_ready(critic_forward(x_small, params, use_bf16=False))
    assert q_f32.shape == (12, 1)
    assert jnp.allclose(q_f32, q_ref, atol=1e-4, rtol=1e-4), "f32 mismatch vs reference"

    q_bf16 = jax.block_until_ready(critic_forward(x_small, params, use_bf16=True))
    assert q_bf16.shape == (12, 1)
    assert jnp.allclose(q_bf16, q_ref, atol=2e-2, rtol=2e-2), "bf16 mismatch vs reference"

    # --- larger ragged batch: exercises the multi-tile + padded path ----------------
    x_big = jax.random.normal(jax.random.fold_in(kx, 1),
                              (300, state_size + action_size), jnp.float32)
    q_ref_b = critic_forward_ref(x_big, params)
    q_b = jax.block_until_ready(critic_forward(x_big, params, tb=128, use_bf16=False))
    assert q_b.shape == (300, 1)
    assert jnp.allclose(q_b, q_ref_b, atol=1e-4, rtol=1e-4), "tiled f32 mismatch vs reference"

    print("KERNEL_OK")
</pallas_src>

<mosaic_0001>
module attributes {stable_mosaic.version = 11 : i64} {
  func.func @critic_kernel(%arg0: i32, %arg1: memref<24x12xf32, #tpu.memory_space<vmem>>, %arg2: memref<64x24xf32, #tpu.memory_space<vmem>>, %arg3: memref<64x1xf32, #tpu.memory_space<vmem>>, %arg4: memref<64x1xf32, #tpu.memory_space<vmem>>, %arg5: memref<64x1xf32, #tpu.memory_space<vmem>>, %arg6: memref<64x64xf32, #tpu.memory_space<vmem>>, %arg7: memref<64x1xf32, #tpu.memory_space<vmem>>, %arg8: memref<64x1xf32, #tpu.memory_space<vmem>>, %arg9: memref<64x1xf32, #tpu.memory_space<vmem>>, %arg10: memref<64x1xf32, #tpu.memory_space<vmem>>, %arg11: memref<1x1xf32, #tpu.memory_space<vmem>>, %arg12: memref<1x12xf32, #tpu.memory_space<vmem>>) attributes {dimension_semantics = [#tpu.dimension_semantics<parallel>], iteration_bounds = array<i64: 1>, scalar_prefetch = 0 : i64, scratch_operands = 0 : i64, tpu.core_type = #tpu.core_type<tc>, window_params = [{transform_indices = @transform_0, window_bounds = array<i64: 24, 12>}, {pipeline_mode = #tpu.pipeline_mode<synchronous>, transform_indices = @transform_1, window_bounds = array<i64: 64, 24>}, {pipeline_mode = #tpu.pipeline_mode<synchronous>, transform_indices = @transform_2, window_bounds = array<i64: 64, 1>}, {pipeline_mode = #tpu.pipeline_mode<synchronous>, transform_indices = @transform_3, window_bounds = array<i64: 64, 1>}, {pipeline_mode = #tpu.pipeline_mode<synchronous>, transform_indices = @transform_4, window_bounds = array<i64: 64, 1>}, {pipeline_mode = #tpu.pipeline_mode<synchronous>, transform_indices = @transform_5, window_bounds = array<i64: 64, 64>}, {pipeline_mode = #tpu.pipeline_mode<synchronous>, transform_indices = @transform_6, window_bounds = array<i64: 64, 1>}, {pipeline_mode = #tpu.pipeline_mode<synchronous>, transform_indices = @transform_7, window_bounds = array<i64: 64, 1>}, {pipeline_mode = #tpu.pipeline_mode<synchronous>, transform_indices = @transform_8, window_bounds = array<i64: 64, 1>}, {pipeline_mode = #tpu.pipeline_mode<synchronous>, transform_indices = @transform_9, window_bounds = array<i64: 64, 1>}, {pipeline_mode = #tpu.pipeline_mode<synchronous>, transform_indices = @transform_10, window_bounds = array<i64: 1, 1>}, {transform_indices = @transform_11, window_bounds = array<i64: 1, 12>}]} {
    %c0 = arith.constant 0 : index
    %c0_0 = arith.constant 0 : index
    %0 = vector.load %arg1[%c0, %c0_0] : memref<24x12xf32, #tpu.memory_space<vmem>>, vector<24x12xf32>
    %c0_1 = arith.constant 0 : index
    %c0_2 = arith.constant 0 : index
    %1 = vector.load %arg2[%c0_1, %c0_2] : memref<64x24xf32, #tpu.memory_space<vmem>>, vector<64x24xf32>
    %cst = arith.constant dense<0.000000e+00> : vector<64x12xf32>
    %2 = tpu.matmul %1, %0, %cst {dimension_numbers = #tpu.dot_dimension_numbers<[1], [0], [0], [1], [0, 0, 1, 1], [], []>} : vector<64x24xf32>, vector<24x12xf32>, vector<64x12xf32> -> vector<64x12xf32>
    %c0_3 = arith.constant 0 : index
    %c0_4 = arith.constant 0 : index
    %3 = vector.load %arg3[%c0_3, %c0_4] : memref<64x1xf32, #tpu.memory_space<vmem>>, vector<64x1xf32>
    %4 = vector.broadcast %3 : vector<64x1xf32> to vector<64x12xf32>
    %5 = arith.addf %2, %4 : vector<64x12xf32>
    %c0_5 = arith.constant 0 : index
    %c0_6 = arith.constant 0 : index
    %6 = vector.load %arg4[%c0_5, %c0_6] : memref<64x1xf32, #tpu.memory_space<vmem>>, vector<64x1xf32>
    %c0_7 = arith.constant 0 : index
    %c0_8 = arith.constant 0 : index
    %7 = vector.load %arg5[%c0_7, %c0_8] : memref<64x1xf32, #tpu.memory_space<vmem>>, vector<64x1xf32>
    %cst_9 = arith.constant dense<0.000000e+00> : vector<12xf32>
    %8 = vector.multi_reduction <add>, %5, %cst_9 [0] : vector<64x12xf32> to vector<12xf32>
    %9 = vector.shape_cast %8 : vector<12xf32> to vector<1x12xf32>
    %10 = arith.mulf %5, %5 : vector<64x12xf32>
    %cst_10 = arith.constant dense<0.000000e+00> : vector<12xf32>
    %11 = vector.multi_reduction <add>, %10, %cst_10 [0] : vector<64x12xf32> to vector<12xf32>
    %12 = vector.shape_cast %11 : vector<12xf32> to vector<1x12xf32>
    %cst_11 = arith.constant 1.562500e-02 : f32
    %13 = vector.broadcast %cst_11 : f32 to vector<1x12xf32>
    %14 = arith.mulf %9, %13 : vector<1x12xf32>
    %cst_12 = arith.constant 1.562500e-02 : f32
    %15 = vector.broadcast %cst_12 : f32 to vector<1x12xf32>
    %16 = arith.mulf %12, %15 : vector<1x12xf32>
    %17 = arith.mulf %14, %14 : vector<1x12xf32>
    %18 = arith.subf %16, %17 : vector<1x12xf32>
    %cst_13 = arith.constant 0.000000e+00 : f32
    %19 = vector.broadcast %cst_13 : f32 to vector<1x12xf32>
    %20 = arith.maximumf %18, %19 : vector<1x12xf32>
    %21 = vector.broadcast %14 : vector<1x12xf32> to vector<64x12xf32>
    %22 = arith.subf %5, %21 : vector<64x12xf32>
    %cst_14 = arith.constant 9.99999974E-6 : f32
    %23 = vector.broadcast %cst_14 : f32 to vector<1x12xf32>
    %24 = arith.addf %20, %23 : vector<1x12xf32>
    %25 = math.rsqrt %24 : vector<1x12xf32>
    %26 = vector.broadcast %25 : vector<1x12xf32> to vector<64x12xf32>
    %27 = arith.mulf %22, %26 : vector<64x12xf32>
    %28 = vector.broadcast %6 : vector<64x1xf32> to vector<64x12xf32>
    %29 = arith.mulf %27, %28 : vector<64x12xf32>
    %30 = vector.broadcast %7 : vector<64x1xf32> to vector<64x12xf32>
    %31 = arith.addf %29, %30 : vector<64x12xf32>
    %cst_15 = arith.constant 0.000000e+00 : f32
    %32 = vector.broadcast %cst_15 : f32 to vector<64x12xf32>
    %33 = arith.maximumf %31, %32 : vector<64x12xf32>
    %c0_16 = arith.constant 0 : index
    %c0_17 = arith.constant 0 : index
    %34 = vector.load %arg6[%c0_16, %c0_17] : memref<64x64xf32, #tpu.memory_space<vmem>>, vector<64x64xf32>
    %cst_18 = arith.constant dense<0.000000e+00> : vector<64x12xf32>
    %35 = tpu.matmul %34, %33, %cst_18 {dimension_numbers = #tpu.dot_dimension_numbers<[1], [0], [0], [1], [0, 0, 1, 1], [], []>} : vector<64x64xf32>, vector<64x12xf32>, vector<64x12xf32> -> vector<64x12xf32>
    %c0_19 = arith.constant 0 : index
    %c0_20 = arith.constant 0 : index
    %36 = vector.load %arg7[%c0_19, %c0_20] : memref<64x1xf32, #tpu.memory_space<vmem>>, vector<64x1xf32>
    %37 = vector.broadcast %36 : vector<64x1xf32> to vector<64x12xf32>
    %38 = arith.addf %35, %37 : vector<64x12xf32>
    %c0_21 = arith.constant 0 : index
    %c0_22 = arith.constant 0 : index
    %39 = vector.load %arg8[%c0_21, %c0_22] : memref<64x1xf32, #tpu.memory_space<vmem>>, vector<64x1xf32>
    %c0_23 = arith.constant 0 : index
    %c0_24 = arith.constant 0 : index
    %40 = vector.load %arg9[%c0_23, %c0_24] : memref<64x1xf32, #tpu.memory_space<vmem>>, vector<64x1xf32>
    %cst_25 = arith.constant dense<0.000000e+00> : vector<12xf32>
    %41 = vector.multi_reduction <add>, %38, %cst_25 [0] : vector<64x12xf32> to vector<12xf32>
    %42 = vector.shape_cast %41 : vector<12xf32> to vector<1x12xf32>
    %43 = arith.mulf %38, %38 : vector<64x12xf32>
    %cst_26 = arith.constant dense<0.000000e+00> : vector<12xf32>
    %44 = vector.multi_reduction <add>, %43, %cst_26 [0] : vector<64x12xf32> to vector<12xf32>
    %45 = vector.shape_cast %44 : vector<12xf32> to vector<1x12xf32>
    %cst_27 = arith.constant 1.562500e-02 : f32
    %46 = vector.broadcast %cst_27 : f32 to vector<1x12xf32>
    %47 = arith.mulf %42, %46 : vector<1x12xf32>
    %cst_28 = arith.constant 1.562500e-02 : f32
    %48 = vector.broadcast %cst_28 : f32 to vector<1x12xf32>
    %49 = arith.mulf %45, %48 : vector<1x12xf32>
    %50 = arith.mulf %47, %47 : vector<1x12xf32>
    %51 = arith.subf %49, %50 : vector<1x12xf32>
    %cst_29 = arith.constant 0.000000e+00 : f32
    %52 = vector.broadcast %cst_29 : f32 to vector<1x12xf32>
    %53 = arith.maximumf %51, %52 : vector<1x12xf32>
    %54 = vector.broadcast %47 : vector<1x12xf32> to vector<64x12xf32>
    %55 = arith.subf %38, %54 : vector<64x12xf32>
    %cst_30 = arith.constant 9.99999974E-6 : f32
    %56 = vector.broadcast %cst_30 : f32 to vector<1x12xf32>
    %57 = arith.addf %53, %56 : vector<1x12xf32>
    %58 = math.rsqrt %57 : vector<1x12xf32>
    %59 = vector.broadcast %58 : vector<1x12xf32> to vector<64x12xf32>
    %60 = arith.mulf %55, %59 : vector<64x12xf32>
    %61 = vector.broadcast %39 : vector<64x1xf32> to vector<64x12xf32>
    %62 = arith.mulf %60, %61 : vector<64x12xf32>
    %63 = vector.broadcast %40 : vector<64x1xf32> to vector<64x12xf32>
    %64 = arith.addf %62, %63 : vector<64x12xf32>
    %cst_31 = arith.constant 0.000000e+00 : f32
    %65 = vector.broadcast %cst_31 : f32 to vector<64x12xf32>
    %66 = arith.maximumf %64, %65 : vector<64x12xf32>
    %c0_32 = arith.constant 0 : index
    %c0_33 = arith.constant 0 : index
    %67 = vector.load %arg10[%c0_32, %c0_33] : memref<64x1xf32, #tpu.memory_space<vmem>>, vector<64x1xf32>
    %68 = vector.broadcast %67 : vector<64x1xf32> to vector<64x12xf32>
    %69 = arith.mulf %66, %68 : vector<64x12xf32>
    %cst_34 = arith.constant dense<0.000000e+00> : vector<12xf32>
    %70 = vector.multi_reduction <add>, %69, %cst_34 [0] : vector<64x12xf32> to vector<12xf32>
    %71 = vector.shape_cast %70 : vector<12xf32> to vector<1x12xf32>
    %c0_35 = arith.constant 0 : index
    %c0_36 = arith.constant 0 : index
    %72 = vector.load %arg11[%c0_35, %c0_36] : memref<1x1xf32, #tpu.memory_space<vmem>>, vector<1x1xf32>
    %73 = vector.broadcast %72 : vector<1x1xf32> to vector<1x12xf32>
    %74 = arith.addf %71, %73 : vector<1x12xf32>
    %c0_37 = arith.constant 0 : index
    %c0_38 = arith.constant 0 : index
    %75 = vector.load %arg12[%c0_37, %c0_38] : memref<1x12xf32, #tpu.memory_space<vmem>>, vector<1x12xf32>
    tpu.vector_store %arg12[%c0_37, %c0_38], %74 {strides = array<i32>} : memref<1x12xf32, #tpu.memory_space<vmem>>, vector<1x12xf32>,
    return
  }
  func.func @transform_0(%arg0: i32) -> (i32, i32) {
    %c0_i32 = arith.constant 0 : i32
    %c0_i32_0 = arith.constant 0 : i32
    return %c0_i32, %arg0 : i32, i32
  }
  func.func @transform_1(%arg0: i32) -> (i32, i32) {
    %c0_i32 = arith.constant 0 : i32
    %c0_i32_0 = arith.constant 0 : i32
    %c0_i32_1 = arith.constant 0 : i32
    return %c0_i32, %c0_i32_0 : i32, i32
  }
  func.func @transform_2(%arg0: i32) -> (i32, i32) {
    %c0_i32 = arith.constant 0 : i32
    %c0_i32_0 = arith.constant 0 : i32
    %c0_i32_1 = arith.constant 0 : i32
    return %c0_i32, %c0_i32_0 : i32, i32
  }
  func.func @transform_3(%arg0: i32) -> (i32, i32) {
    %c0_i32 = arith.constant 0 : i32
    %c0_i32_0 = arith.constant 0 : i32
    %c0_i32_1 = arith.constant 0 : i32
    return %c0_i32, %c0_i32_0 : i32, i32
  }
  func.func @transform_4(%arg0: i32) -> (i32, i32) {
    %c0_i32 = arith.constant 0 : i32
    %c0_i32_0 = arith.constant 0 : i32
    %c0_i32_1 = arith.constant 0 : i32
    return %c0_i32, %c0_i32_0 : i32, i32
  }
  func.func @transform_5(%arg0: i32) -> (i32, i32) {
    %c0_i32 = arith.constant 0 : i32
    %c0_i32_0 = arith.constant 0 : i32
    %c0_i32_1 = arith.constant 0 : i32
    return %c0_i32, %c0_i32_0 : i32, i32
  }
  func.func @transform_6(%arg0: i32) -> (i32, i32) {
    %c0_i32 = arith.constant 0 : i32
    %c0_i32_0 = arith.constant 0 : i32
    %c0_i32_1 = arith.constant 0 : i32
    return %c0_i32, %c0_i32_0 : i32, i32
  }
  func.func @transform_7(%arg0: i32) -> (i32, i32) {
    %c0_i32 = arith.constant 0 : i32
    %c0_i32_0 = arith.constant 0 : i32
    %c0_i32_1 = arith.constant 0 : i32
    return %c0_i32, %c0_i32_0 : i32, i32
  }
  func.func @transform_8(%arg0: i32) -> (i32, i32) {
    %c0_i32 = arith.constant 0 : i32
    %c0_i32_0 = arith.constant 0 : i32
    %c0_i32_1 = arith.constant 0 : i32
    return %c0_i32, %c0_i32_0 : i32, i32
  }
  func.func @transform_9(%arg0: i32) -> (i32, i32) {
    %c0_i32 = arith.constant 0 : i32
    %c0_i32_0 = arith.constant 0 : i32
    %c0_i32_1 = arith.constant 0 : i32
    return %c0_i32, %c0_i32_0 : i32, i32
  }
  func.func @transform_10(%arg0: i32) -> (i32, i32) {
    %c0_i32 = arith.constant 0 : i32
    %c0_i32_0 = arith.constant 0 : i32
    %c0_i32_1 = arith.constant 0 : i32
    return %c0_i32, %c0_i32_0 : i32, i32
  }
  func.func @transform_11(%arg0: i32) -> (i32, i32) {
    %c0_i32 = arith.constant 0 : i32
    %c0_i32_0 = arith.constant 0 : i32
    return %c0_i32, %arg0 : i32, i32
  }
}

</mosaic_0001>

<llo_original>
// kernel: tpu_custom_call.1
$region0: #{tpu_custom_call.1}
  #allocation0 [shape = 'u32[]', space=smem, size = 0x4, offset = 0x4, fixed_abs, tag = 'smem constant byte address 0x4 - core index']
  #allocation1 [shape = 'u32[144,128]{1,0:T(1,128)}', space=vmem, size = 0x12000, scoped, tag = 'internal scratch']
  #allocation2 [shape = 'f32[1,1]{1,0:T(1,128)S(1)}', space=vmem, size = 0x200, scoped, tag = 'scoped memory for tpu_custom_call.1']
  %s0 = inlined_call_operand.vmem [shape: f32[24,12], index: 0, kind: input, shape index: {}]
  %s1 = inlined_call_operand.vmem [shape: f32[64,24], index: 1, kind: input, shape index: {}]
  %s2 = inlined_call_operand.vmem [shape: f32[64,1], index: 2, kind: input, shape index: {}]
  %s3 = inlined_call_operand.vmem [shape: f32[64,1], index: 3, kind: input, shape index: {}]
  %s4 = inlined_call_operand.vmem [shape: f32[64,1], index: 4, kind: input, shape index: {}]
  %s5 = inlined_call_operand.vmem [shape: f32[64,64], index: 5, kind: input, shape index: {}]
  %s6 = inlined_call_operand.vmem [shape: f32[64,1], index: 6, kind: input, shape index: {}]
  %s7 = inlined_call_operand.vmem [shape: f32[64,1], index: 7, kind: input, shape index: {}]
  %s8 = inlined_call_operand.vmem [shape: f32[64,1], index: 8, kind: input, shape index: {}]
  %s9 = inlined_call_operand.vmem [shape: f32[64,1], index: 9, kind: input, shape index: {}]
  %s10 = inlined_call_operand.<no memory space> [shape: f32[1,1], index: 10, kind: input, shape index: {}]
  %s11 = inlined_call_operand.hbm [shape: f32[1,12], index: 11, kind: output, shape index: {}]
  %s12 = sld [smem:[#allocation0]]
  $region54: #{tpu_custom_call.1} parent=0
    _
  %s14 = ssub.s32 1, %s12
  %s15 = scalar_select 0, %s14, %s12
  %v16 = vstv %s10
  %17 = vst [vmem:[#allocation2] sm:$0x1] %v16
  $region1: #{tpu_custom_call.1} parent=0
    #allocation3 [shape = 'u8[512]{0}', space=vmem, size = 0x400, scoped, tag = 'output window, operand 0, single buffered']
    #allocation4 [shape = 's32[1]{0}', space=sflag, size = 0x4, scoped, tag = 'scoped memory for tpu_custom_call.1']
    %18 = vsyncpa [#allocation4], 0
    // Predicated region
    $region2: #{tpu_custom_call.1} parent=1 // pred_check
      _
    $region3: #{tpu_custom_call.1} parent=1 // pred_check_branch
      %20 = sbr.rel (0) target = $region5
    $region4: #{tpu_custom_call.1} parent=1 // pred_region
      _
    $region5: #{tpu_custom_call.1} parent=1 // pred_fallthru
      _
    // Predicated region
    $region6: #{tpu_custom_call.1} parent=1 // pred_check
      _
    $region7: #{tpu_custom_call.1} parent=1 // pred_check_branch
      %22 = sbr.rel (0) target = $region9
    $region8: #{tpu_custom_call.1} parent=1 // pred_region
      _
    $region9: #{tpu_custom_call.1} parent=1 // pred_fallthru
      _
    // Predicated region
    $region10: #{tpu_custom_call.1} parent=1 // pred_check
      _
    $region11: #{tpu_custom_call.1} parent=1 // pred_check_branch
      %24 = sbr.rel (0) target = $region13
    $region12: #{tpu_custom_call.1} parent=1 // pred_region
      _
    $region13: #{tpu_custom_call.1} parent=1 // pred_fallthru
      _
    // Predicated region
    $region14: #{tpu_custom_call.1} parent=1 // pred_check
      _
    $region15: #{tpu_custom_call.1} parent=1 // pred_check_branch
      %26 = sbr.rel (0) target = $region17
    $region16: #{tpu_custom_call.1} parent=1 // pred_region
      _
    $region17: #{tpu_custom_call.1} parent=1 // pred_fallthru
      _
    // Predicated region
    $region18: #{tpu_custom_call.1} parent=1 // pred_check
      _
    $region19: #{tpu_custom_call.1} parent=1 // pred_check_branch
      %28 = sbr.rel (0) target = $region21
    $region20: #{tpu_custom_call.1} parent=1 // pred_region
      _
    $region21: #{tpu_custom_call.1} parent=1 // pred_fallthru
      _
    // Predicated region
    $region22: #{tpu_custom_call.1} parent=1 // pred_check
      _
    $region23: #{tpu_custom_call.1} parent=1 // pred_check_branch
      %30 = sbr.rel (0) target = $region25
    $region24: #{tpu_custom_call.1} parent=1 // pred_region
      _
    $region25: #{tpu_custom_call.1} parent=1 // pred_fallthru
      _
    // Predicated region
    $region26: #{tpu_custom_call.1} parent=1 // pred_check
      _
    $region27: #{tpu_custom_call.1} parent=1 // pred_check_branch
      %32 = sbr.rel (0) target = $region29
    $region28: #{tpu_custom_call.1} parent=1 // pred_region
      _
    $region29: #{tpu_custom_call.1} parent=1 // pred_fallthru
      _
    // Predicated region
    $region30: #{tpu_custom_call.1} parent=1 // pred_check
      _
    $region31: #{tpu_custom_call.1} parent=1 // pred_check_branch
      %34 = sbr.rel (0) target = $region33
    $region32: #{tpu_custom_call.1} parent=1 // pred_region
      _
    $region33: #{tpu_custom_call.1} parent=1 // pred_fallthru
      _
    // Predicated region
    $region34: #{tpu_custom_call.1} parent=1 // pred_check
      _
    $region35: #{tpu_custom_call.1} parent=1 // pred_check_branch
      %36 = sbr.rel (0) target = $region37
    $region36: #{tpu_custom_call.1} parent=1 // pred_region
      _
    $region37: #{tpu_custom_call.1} parent=1 // pred_fallthru
      _
    // Predicated region
    $region38: #{tpu_custom_call.1} parent=1 // pred_check
      _
    $region39: #{tpu_custom_call.1} parent=1 // pred_check_branch
      %38 = sbr.rel (0) target = $region41
    $region40: #{tpu_custom_call.1} parent=1 // pred_region
      _
    $region41: #{tpu_custom_call.1} parent=1 // pred_fallthru
      _
    // Predicated region
    $region42: #{tpu_custom_call.1} parent=1 // pred_check
      _
    $region43: #{tpu_custom_call.1} parent=1 // pred_check_branch
      %40 = sbr.rel (0) target = $region45
    $region44: #{tpu_custom_call.1} parent=1 // pred_region
      _
    $region45: #{tpu_custom_call.1} parent=1 // pred_fallthru
      _
    %v41 = vld [vmem:[%s0] sm:$0xff]
    %v42 = vld [vmem:[%s0 + $0x8] sm:$0xff]
    %v43 = vld [vmem:[%s0 + $0x10] sm:$0xff]
    %v44 = vld [vmem:[%s1] sm:$0xff]
    %v45 = vld [vmem:[%s1 + $0x8] sm:$0xff]
    %v46 = vld [vmem:[%s1 + $0x10] sm:$0xff]
    %v47 = vld [vmem:[%s1 + $0x18] sm:$0xff]
    %v48 = vld [vmem:[%s1 + $0x20] sm:$0xff]
    %v49 = vld [vmem:[%s1 + $0x28] sm:$0xff]
    %v50 = vld [vmem:[%s1 + $0x30] sm:$0xff]
    %v51 = vld [vmem:[%s1 + $0x38] sm:$0xff]
    %v52 = vld [vmem:[%s2] sm:$0xff]
    %v53 = vld [vmem:[%s2 + $0x8] sm:$0xff]
    %v54 = vld [vmem:[%s2 + $0x10] sm:$0xff]
    %v55 = vld [vmem:[%s2 + $0x18] sm:$0xff]
    %v56 = vld [vmem:[%s2 + $0x20] sm:$0xff]
    %v57 = vld [vmem:[%s2 + $0x28] sm:$0xff]
    %v58 = vld [vmem:[%s2 + $0x30] sm:$0xff]
    %v59 = vld [vmem:[%s2 + $0x38] sm:$0xff]
    %61 = vset.pattern.permute.xlu0 0
    %62 = vperm.xlu0 %61, %v52
    %v63 = vpop.permute.xlu0 %62
    %66 = vset.pattern.permute.xlu0 0
    %67 = vperm.xlu0 %66, %v53
    %v68 = vpop.permute.xlu0 %67
    %71 = vset.pattern.permute.xlu0 0
    %72 = vperm.xlu0 %71, %v54
    %v73 = vpop.permute.xlu0 %72
    %76 = vset.pattern.permute.xlu0 0
    %77 = vperm.xlu0 %76, %v55
    %v78 = vpop.permute.xlu0 %77
    %81 = vset.pattern.permute.xlu0 0
    %82 = vperm.xlu0 %81, %v56
    %v83 = vpop.permute.xlu0 %82
    %86 = vset.pattern.permute.xlu0 0
    %87 = vperm.xlu0 %86, %v57
    %v88 = vpop.permute.xlu0 %87
    %91 = vset.pattern.permute.xlu0 0
    %92 = vperm.xlu0 %91, %v58
    %v93 = vpop.permute.xlu0 %92
    %96 = vset.pattern.permute.xlu0 0
    %97 = vperm.xlu0 %96, %v59
    %v98 = vpop.permute.xlu0 %97
    %vm100 = vcmask 195584
    %v102 = vsel %vm100, %v44, 0
    %v105 = vsel %vm100, %v45, 0
    %v108 = vsel %vm100, %v46, 0
    %v111 = vsel %vm100, %v47, 0
    %v114 = vsel %vm100, %v48, 0
    %v117 = vsel %vm100, %v49, 0
    %v120 = vsel %vm100, %v50, 0
    %v123 = vsel %vm100, %v51, 0
    %125 = vmatprep.subr.mxu0 0.0
    %126 = vmatpush1.msra.mxu0 %v41
    %127 = vmatprep.subr.mxu0 0.0
    %128 = vmatpush1.msra.mxu0 %v42
    %129 = vmatprep.subr.mxu0 0.0
    %130 = vmatpush1.msra.mxu0 %v43
    %131 = vmatprep.subr.mxu0 0.0
    %132 = vmatpush1.msra.mxu0 0.0
    %133 = vmatprep.subr.mxu0 0.0
    %134 = vmatpush1.msra.mxu0 0.0
    %135 = vmatprep.subr.mxu0 0.0
    %136 = vmatpush1.msra.mxu0 0.0
    %137 = vmatprep.subr.mxu0 0.0
    %138 = vmatpush1.msra.mxu0 0.0
    %139 = vmatprep.subr.mxu0 0.0
    %140 = vmatpush1.msra.mxu0 0.0
    %141 = vmatprep.subr.mxu0 0.0
    %142 = vmatpush1.msra.mxu0 0.0
    %143 = vmatprep.subr.mxu0 0.0
    %144 = vmatpush1.msra.mxu0 0.0
    %145 = vmatprep.subr.mxu0 0.0
    %146 = vmatpush1.msra.mxu0 0.0
    %147 = vmatprep.subr.mxu0 0.0
    %148 = vmatpush1.msra.mxu0 0.0
    %149 = vmatprep.subr.mxu0 0.0
    %150 = vmatpush1.msra.mxu0 0.0
    %151 = vmatprep.subr.mxu0 0.0
    %152 = vmatpush1.msra.mxu0 0.0
    %153 = vmatprep.subr.mxu0 0.0
    %154 = vmatpush1.msra.mxu0 0.0
    %155 = vmatprep.subr.mxu0 0.0
    %156 = vmatpush1.msra.mxu0 0.0
    %157 = vmatprep.subr.mxu0 0.0
    %158 = vmatpush1.msra.mxu0 0.0
    %159 = vmatprep.subr.mxu0 0.0
    %160 = vmatpush1.msra.mxu0 0.0
    %161 = vmatprep.subr.mxu0 0.0
    %162 = vmatpush1.msra.mxu0 0.0
    %163 = vmatprep.subr.mxu0 0.0
    %164 = vmatpush1.msra.mxu0 0.0
    %165 = vmatprep.subr.mxu0 0.0
    %166 = vmatpush1.msra.mxu0 0.0
    %167 = vmatprep.subr.mxu0 0.0
    %168 = vmatpush1.msra.mxu0 0.0
    %169 = vmatprep.subr.mxu0 0.0
    %170 = vmatpush1.msra.mxu0 0.0
    %171 = vmatprep.subr.mxu0 0.0
    %172 = vmatpush1.msra.mxu0 0.0
    %173 = vmatprep.subr.mxu0 0.0
    %174 = vmatpush1.msra.mxu0 0.0
    %175 = vmatprep.subr.mxu0 0.0
    %176 = vmatpush1.msra.mxu0 0.0
    %177 = vmatprep.subr.mxu0 0.0
    %178 = vmatpush1.msra.mxu0 0.0
    %179 = vmatprep.subr.mxu0 0.0
    %180 = vmatpush1.msra.mxu0 0.0
    %181 = vmatprep.subr.mxu0 0.0
    %182 = vmatpush1.msra.mxu0 0.0
    %183 = vmatprep.subr.mxu0 0.0
    %184 = vmatpush1.msra.mxu0 0.0
    %185 = vmatprep.subr.mxu0 0.0
    %186 = vmatpush1.msra.mxu0 0.0
    %187 = vmatprep.subr.mxu0 0.0
    %188 = vmatpush1.msra.mxu0 0.0
    %189 = vmatprep.mubr.f32.mxu0 0.0
    %190 = vmatmul.mubr.f32.gmra.mrb[0].mxu0 %v102
    %v191 = vpop.f32.mrb[0].mxu0
    %v192 = vadd.f32 %v63, %v191
    %v193 = vpop.f32.mrb[0].mxu0
    %194 = vmatprep.mubr.f32.mxu0 0.0
    %195 = vmatmul.mubr.f32.gmra.mrb[0].mxu0 %v105
    %v196 = vpop.f32.mrb[0].mxu0
    %v197 = vadd.f32 %v68, %v196
    %v198 = vpop.f32.mrb[0].mxu0
    %199 = vmatprep.mubr.f32.mxu0 0.0
    %200 = vmatmul.mubr.f32.gmra.mrb[0].mxu0 %v108
    %v201 = vpop.f32.mrb[0].mxu0
    %v202 = vadd.f32 %v73, %v201
    %v203 = vpop.f32.mrb[0].mxu0
    %204 = vmatprep.mubr.f32.mxu0 0.0
    %205 = vmatmul.mubr.f32.gmra.mrb[0].mxu0 %v111
    %v206 = vpop.f32.mrb[0].mxu0
    %v207 = vadd.f32 %v78, %v206
    %v208 = vpop.f32.mrb[0].mxu0
    %209 = vmatprep.mubr.f32.mxu0 0.0
    %210 = vmatmul.mubr.f32.gmra.mrb[0].mxu0 %v114
    %v211 = vpop.f32.mrb[0].mxu0
    %v212 = vadd.f32 %v83, %v211
    %v213 = vpop.f32.mrb[0].mxu0
    %214 = vmatprep.mubr.f32.mxu0 0.0
    %215 = vmatmul.mubr.f32.gmra.mrb[0].mxu0 %v117
    %v216 = vpop.f32.mrb[0].mxu0
    %v217 = vadd.f32 %v88, %v216
    %v218 = vpop.f32.mrb[0].mxu0
    %219 = vmatprep.mubr.f32.mxu0 0.0
    %220 = vmatmul.mubr.f32.gmra.mrb[0].mxu0 %v120
    %v221 = vpop.f32.mrb[0].mxu0
    %v222 = vadd.f32 %v93, %v221
    %v223 = vpop.f32.mrb[0].mxu0
    %224 = vmatprep.mubr.f32.mxu0 0.0
    %225 = vmatmul.mubr.f32.gmra.mrb[0].mxu0 %v123
    %v226 = vpop.f32.mrb[0].mxu0
    %v227 = vadd.f32 %v98, %v226
    %v228 = vpop.f32.mrb[0].mxu0
    %229 = vdwg.mxu0
    %v230 = vld [vmem:[%s3] sm:$0xff]
    %v231 = vld [vmem:[%s3 + $0x8] sm:$0xff]
    %v232 = vld [vmem:[%s3 + $0x10] sm:$0xff]
    %v233 = vld [vmem:[%s3 + $0x18] sm:$0xff]
    %v234 = vld [vmem:[%s3 + $0x20] sm:$0xff]
    %v235 = vld [vmem:[%s3 + $0x28] sm:$0xff]
    %v236 = vld [vmem:[%s3 + $0x30] sm:$0xff]
    %v237 = vld [vmem:[%s3 + $0x38] sm:$0xff]
    %v238 = vld [vmem:[%s4] sm:$0xff]
    %v239 = vld [vmem:[%s4 + $0x8] sm:$0xff]
    %v240 = vld [vmem:[%s4 + $0x10] sm:$0xff]
    %v241 = vld [vmem:[%s4 + $0x18] sm:$0xff]
    %v242 = vld [vmem:[%s4 + $0x20] sm:$0xff]
    %v243 = vld [vmem:[%s4 + $0x28] sm:$0xff]
    %v244 = vld [vmem:[%s4 + $0x30] sm:$0xff]
    %v245 = vld [vmem:[%s4 + $0x38] sm:$0xff]
    %vm246 = vcmask 97280
    %v247 = vsel %vm246, %v192, 0.0
    %v248 = vsel %vm246, %v197, 0.0
    %v249 = vadd.f32 %v247, %v248
    %v250 = vsel %vm246, %v202, 0.0
    %v251 = vadd.f32 %v249, %v250
    %v252 = vsel %vm246, %v207, 0.0
    %v253 = vadd.f32 %v251, %v252
    %v254 = vsel %vm246, %v212, 0.0
    %v255 = vadd.f32 %v253, %v254
    %v256 = vsel %vm246, %v217, 0.0
    %v257 = vadd.f32 %v255, %v256
    %v258 = vsel %vm246, %v222, 0.0
    %v259 = vadd.f32 %v257, %v258
    %v260 = vsel %vm246, %v227, 0.0
    %v261 = vadd.f32 %v259, %v260
    %v262 = vrot.slane %v261, 4
    %v263 = vadd.f32 %v261, %v262
    %v264 = vrot.slane %v263, 2
    %v265 = vadd.f32 %v263, %v264
    %v266 = vrot.slane %v265, 1
    %v267 = vadd.f32 %v265, %v266
    %v268 = vmul.f32 %v192, %v192
    %v269 = vmul.f32 %v197, %v197
    %v270 = vmul.f32 %v202, %v202
    %v271 = vmul.f32 %v207, %v207
    %v272 = vmul.f32 %v212, %v212
    %v273 = vmul.f32 %v217, %v217
    %v274 = vmul.f32 %v222, %v222
    %v275 = vmul.f32 %v227, %v227
    %v276 = vsel %vm246, %v268, 0.0
    %v277 = vsel %vm246, %v269, 0.0
    %v278 = vadd.f32 %v276, %v277
    %v279 = vsel %vm246, %v270, 0.0
    %v280 = vadd.f32 %v278, %v279
    %v281 = vsel %vm246, %v271, 0.0
    %v282 = vadd.f32 %v280, %v281
    %v283 = vsel %vm246, %v272, 0.0
    %v284 = vadd.f32 %v282, %v283
    %v285 = vsel %vm246, %v273, 0.0
    %v286 = vadd.f32 %v284, %v285
    %v287 = vsel %vm246, %v274, 0.0
    %v288 = vadd.f32 %v286, %v287
    %v289 = vsel %vm246, %v275, 0.0
    %v290 = vadd.f32 %v288, %v289
    %v291 = vrot.slane %v290, 4
    %v292 = vadd.f32 %v290, %v291
    %v293 = vrot.slane %v292, 2
    %v294 = vadd.f32 %v292, %v293
    %v295 = vrot.slane %v294, 1
    %v296 = vadd.f32 %v294, %v295
    %v297 = vmul.f32 %v267, 0.015625
    %v298 = vmul.f32 %v296, 0.015625
    %v299 = vmul.f32 %v297, %v297
    %v300 = vsub.f32 %v298, %v299
    %v301 = vmax.f32 %v300, 0.0
    %v302 = vsub.f32 %v192, %v297
    %v303 = vsub.f32 %v197, %v297
    %v304 = vsub.f32 %v202, %v297
    %v305 = vsub.f32 %v207, %v297
    %v306 = vsub.f32 %v212, %v297
    %v307 = vsub.f32 %v217, %v297
    %v308 = vsub.f32 %v222, %v297
    %v309 = vsub.f32 %v227, %v297
    %v310 = vadd.f32 %v301, 1e-05
    %v311 = vrsqrt.pop %v310
    %v312 = vmul.f32 %v302, %v311
    %v313 = vmul.f32 %v303, %v311
    %v314 = vmul.f32 %v304, %v311
    %v315 = vmul.f32 %v305, %v311
    %v316 = vmul.f32 %v306, %v311
    %v317 = vmul.f32 %v307, %v311
    %v318 = vmul.f32 %v308, %v311
    %v319 = vmul.f32 %v309, %v311
    %321 = vset.pattern.permute.xlu0 0
    %322 = vperm.xlu0 %321, %v230
    %v323 = vpop.permute.xlu0 %322
    %326 = vset.pattern.permute.xlu0 0
    %327 = vperm.xlu0 %326, %v231
    %v328 = vpop.permute.xlu0 %327
    %331 = vset.pattern.permute.xlu0 0
    %332 = vperm.xlu0 %331, %v232
    %v333 = vpop.permute.xlu0 %332
    %336 = vset.pattern.permute.xlu0 0
    %337 = vperm.xlu0 %336, %v233
    %v338 = vpop.permute.xlu0 %337
    %341 = vset.pattern.permute.xlu0 0
    %342 = vperm.xlu0 %341, %v234
    %v343 = vpop.permute.xlu0 %342
    %346 = vset.pattern.permute.xlu0 0
    %347 = vperm.xlu0 %346, %v235
    %v348 = vpop.permute.xlu0 %347
    %351 = vset.pattern.permute.xlu0 0
    %352 = vperm.xlu0 %351, %v236
    %v353 = vpop.permute.xlu0 %352
    %356 = vset.pattern.permute.xlu0 0
    %357 = vperm.xlu0 %356, %v237
    %v358 = vpop.permute.xlu0 %357
    %v360 = vmul.f32 %v312, %v323
    %v361 = vmul.f32 %v313, %v328
    %v362 = vmul.f32 %v314, %v333
    %v363 = vmul.f32 %v315, %v338
    %v364 = vmul.f32 %v316, %v343
    %v365 = vmul.f32 %v317, %v348
    %v366 = vmul.f32 %v318, %v353
    %v367 = vmul.f32 %v319, %v358
    %369 = vset.pattern.permute.xlu0 0
    %370 = vperm.xlu0 %369, %v238
    %v371 = vpop.permute.xlu0 %370
    %374 = vset.pattern.permute.xlu0 0
    %375 = vperm.xlu0 %374, %v239
    %v376 = vpop.permute.xlu0 %375
    %379 = vset.pattern.permute.xlu0 0
    %380 = vperm.xlu0 %379, %v240
    %v381 = vpop.permute.xlu0 %380
    %384 = vset.pattern.permute.xlu0 0
    %385 = vperm.xlu0 %384, %v241
    %v386 = vpop.permute.xlu0 %385
    %389 = vset.pattern.permute.xlu0 0
    %390 = vperm.xlu0 %389, %v242
    %v391 = vpop.permute.xlu0 %390
    %394 = vset.pattern.permute.xlu0 0
    %395 = vperm.xlu0 %394, %v243
    %v396 = vpop.permute.xlu0 %395
    %399 = vset.pattern.permute.xlu0 0
    %400 = vperm.xlu0 %399, %v244
    %v401 = vpop.permute.xlu0 %400
    %404 = vset.pattern.permute.xlu0 0
    %405 = vperm.xlu0 %404, %v245
    %v406 = vpop.permute.xlu0 %405
    %v408 = vadd.f32 %v360, %v371
    %v409 = vadd.f32 %v361, %v376
    %v410 = vadd.f32 %v362, %v381
    %v411 = vadd.f32 %v363, %v386
    %v412 = vadd.f32 %v364, %v391
    %v413 = vadd.f32 %v365, %v396
    %v414 = vadd.f32 %v366, %v401
    %v415 = vadd.f32 %v367, %v406
    %v416 = vmax.f32 %v408, 0.0
    %v417 = vmax.f32 %v409, 0.0
    %v418 = vmax.f32 %v410, 0.0
    %v419 = vmax.f32 %v411, 0.0
    %v420 = vmax.f32 %v412, 0.0
    %v421 = vmax.f32 %v413, 0.0
    %v422 = vmax.f32 %v414, 0.0
    %v423 = vmax.f32 %v415, 0.0
    %v424 = vld [vmem:[%s5] sm:$0xff]
    %v425 = vld [vmem:[%s5 + $0x8] sm:$0xff]
    %v426 = vld [vmem:[%s5 + $0x10] sm:$0xff]
    %v427 = vld [vmem:[%s5 + $0x18] sm:$0xff]
    %v428 = vld [vmem:[%s5 + $0x20] sm:$0xff]
    %v429 = vld [vmem:[%s5 + $0x28] sm:$0xff]
    %v430 = vld [vmem:[%s5 + $0x30] sm:$0xff]
    %v431 = vld [vmem:[%s5 + $0x38] sm:$0xff]
    %v432 = vld [vmem:[%s6] sm:$0xff]
    %v433 = vld [vmem:[%s6 + $0x8] sm:$0xff]
    %v434 = vld [vmem:[%s6 + $0x10] sm:$0xff]
    %v435 = vld [vmem:[%s6 + $0x18] sm:$0xff]
    %v436 = vld [vmem:[%s6 + $0x20] sm:$0xff]
    %v437 = vld [vmem:[%s6 + $0x28] sm:$0xff]
    %v438 = vld [vmem:[%s6 + $0x30] sm:$0xff]
    %v439 = vld [vmem:[%s6 + $0x38] sm:$0xff]
    %441 = vset.pattern.permute.xlu0 0
    %442 = vperm.xlu0 %441, %v432
    %v443 = vpop.permute.xlu0 %442
    %446 = vset.pattern.permute.xlu0 0
    %447 = vperm.xlu0 %446, %v433
    %v448 = vpop.permute.xlu0 %447
    %451 = vset.pattern.permute.xlu0 0
    %452 = vperm.xlu0 %451, %v434
    %v453 = vpop.permute.xlu0 %452
    %456 = vset.pattern.permute.xlu0 0
    %457 = vperm.xlu0 %456, %v435
    %v458 = vpop.permute.xlu0 %457
    %461 = vset.pattern.permute.xlu0 0
    %462 = vperm.xlu0 %461, %v436
    %v463 = vpop.permute.xlu0 %462
    %466 = vset.pattern.permute.xlu0 0
    %467 = vperm.xlu0 %466, %v437
    %v468 = vpop.permute.xlu0 %467
    %471 = vset.pattern.permute.xlu0 0
    %472 = vperm.xlu0 %471, %v438
    %v473 = vpop.permute.xlu0 %472
    %476 = vset.pattern.permute.xlu0 0
    %477 = vperm.xlu0 %476, %v439
    %v478 = vpop.permute.xlu0 %477
    %vm480 = vcmask 523264
    %v482 = vsel %vm480, %v424, 0
    %v485 = vsel %vm480, %v425, 0
    %v488 = vsel %vm480, %v426, 0
    %v491 = vsel %vm480, %v427, 0
    %v494 = vsel %vm480, %v428, 0
    %v497 = vsel %vm480, %v429, 0
    %v500 = vsel %vm480, %v430, 0
    %v503 = vsel %vm480, %v431, 0
    %505 = vmatprep.subr.mxu0 0.0
    %506 = vmatpush1.msra.mxu0 %v416
    %507 = vmatprep.subr.mxu0 0.0
    %508 = vmatpush1.msra.mxu0 %v417
    %509 = vmatprep.subr.mxu0 0.0
    %510 = vmatpush1.msra.mxu0 %v418
    %511 = vmatprep.subr.mxu0 0.0
    %512 = vmatpush1.msra.mxu0 %v419
    %513 = vmatprep.subr.mxu0 0.0
    %514 = vmatpush1.msra.mxu0 %v420
    %515 = vmatprep.subr.mxu0 0.0
    %516 = vmatpush1.msra.mxu0 %v421
    %517 = vmatprep.subr.mxu0 0.0
    %518 = vmatpush1.msra.mxu0 %v422
    %519 = vmatprep.subr.mxu0 0.0
    %520 = vmatpush1.msra.mxu0 %v423
    %521 = vmatprep.subr.mxu0 0.0
    %522 = vmatpush1.msra.mxu0 0.0
    %523 = vmatprep.subr.mxu0 0.0
    %524 = vmatpush1.msra.mxu0 0.0
    %525 = vmatprep.subr.mxu0 0.0
    %526 = vmatpush1.msra.mxu0 0.0
    %527 = vmatprep.subr.mxu0 0.0
    %528 = vmatpush1.msra.mxu0 0.0
    %529 = vmatprep.subr.mxu0 0.0
    %530 = vmatpush1.msra.mxu0 0.0
    %531 = vmatprep.subr.mxu0 0.0
    %532 = vmatpush1.msra.mxu0 0.0
    %533 = vmatprep.subr.mxu0 0.0
    %534 = vmatpush1.msra.mxu0 0.0
    %535 = vmatprep.subr.mxu0 0.0
    %536 = vmatpush1.msra.mxu0 0.0
    %537 = vmatprep.subr.mxu0 0.0
    %538 = vmatpush1.msra.mxu0 0.0
    %539 = vmatprep.subr.mxu0 0.0
    %540 = vmatpush1.msra.mxu0 0.0
    %541 = vmatprep.subr.mxu0 0.0
    %542 = vmatpush1.msra.mxu0 0.0
    %543 = vmatprep.subr.mxu0 0.0
    %544 = vmatpush1.msra.mxu0 0.0
    %545 = vmatprep.subr.mxu0 0.0
    %546 = vmatpush1.msra.mxu0 0.0
    %547 = vmatprep.subr.mxu0 0.0
    %548 = vmatpush1.msra.mxu0 0.0
    %549 = vmatprep.subr.mxu0 0.0
    %550 = vmatpush1.msra.mxu0 0.0
    %551 = vmatprep.subr.mxu0 0.0
    %552 = vmatpush1.msra.mxu0 0.0
    %553 = vmatprep.subr.mxu0 0.0
    %554 = vmatpush1.msra.mxu0 0.0
    %555 = vmatprep.subr.mxu0 0.0
    %556 = vmatpush1.msra.mxu0 0.0
    %557 = vmatprep.subr.mxu0 0.0
    %558 = vmatpush1.msra.mxu0 0.0
    %559 = vmatprep.subr.mxu0 0.0
    %560 = vmatpush1.msra.mxu0 0.0
    %561 = vmatprep.subr.mxu0 0.0
    %562 = vmatpush1.msra.mxu0 0.0
    %563 = vmatprep.subr.mxu0 0.0
    %564 = vmatpush1.msra.mxu0 0.0
    %565 = vmatprep.subr.mxu0 0.0
    %566 = vmatpush1.msra.mxu0 0.0
    %567 = vmatprep.subr.mxu0 0.0
    %568 = vmatpush1.msra.mxu0 0.0
    %569 = vmatprep.mubr.f32.mxu0 0.0
    %570 = vmatmul.mubr.f32.gmra.mrb[0].mxu0 %v482
    %v571 = vpop.f32.mrb[0].mxu0
    %v572 = vadd.f32 %v443, %v571
    %v573 = vpop.f32.mrb[0].mxu0
    %574 = vmatprep.mubr.f32.mxu0 0.0
    %575 = vmatmul.mubr.f32.gmra.mrb[0].mxu0 %v485
    %v576 = vpop.f32.mrb[0].mxu0
    %v577 = vadd.f32 %v448, %v576
    %v578 = vpop.f32.mrb[0].mxu0
    %579 = vmatprep.mubr.f32.mxu0 0.0
    %580 = vmatmul.mubr.f32.gmra.mrb[0].mxu0 %v488
    %v581 = vpop.f32.mrb[0].mxu0
    %v582 = vadd.f32 %v453, %v581
    %v583 = vpop.f32.mrb[0].mxu0
    %584 = vmatprep.mubr.f32.mxu0 0.0
    %585 = vmatmul.mubr.f32.gmra.mrb[0].mxu0 %v491
    %v586 = vpop.f32.mrb[0].mxu0
    %v587 = vadd.f32 %v458, %v586
    %v588 = vpop.f32.mrb[0].mxu0
    %589 = vmatprep.mubr.f32.mxu0 0.0
    %590 = vmatmul.mubr.f32.gmra.mrb[0].mxu0 %v494
    %v591 = vpop.f32.mrb[0].mxu0
    %v592 = vadd.f32 %v463, %v591
    %v593 = vpop.f32.mrb[0].mxu0
    %594 = vmatprep.mubr.f32.mxu0 0.0
    %595 = vmatmul.mubr.f32.gmra.mrb[0].mxu0 %v497
    %v596 = vpop.f32.mrb[0].mxu0
    %v597 = vadd.f32 %v468, %v596
    %v598 = vpop.f32.mrb[0].mxu0
    %599 = vmatprep.mubr.f32.mxu0 0.0
    %600 = vmatmul.mubr.f32.gmra.mrb[0].mxu0 %v500
    %v601 = vpop.f32.mrb[0].mxu0
    %v602 = vadd.f32 %v473, %v601
    %v603 = vpop.f32.mrb[0].mxu0
    %604 = vmatprep.mubr.f32.mxu0 0.0
    %605 = vmatmul.mubr.f32.gmra.mrb[0].mxu0 %v503
    %v606 = vpop.f32.mrb[0].mxu0
    %v607 = vadd.f32 %v478, %v606
    %v608 = vpop.f32.mrb[0].mxu0
    %609 = vdwg.mxu0
    %v610 = vld [vmem:[%s7] sm:$0xff]
    %v611 = vld [vmem:[%s7 + $0x8] sm:$0xff]
    %v612 = vld [vmem:[%s7 + $0x10] sm:$0xff]
    %v613 = vld [vmem:[%s7 + $0x18] sm:$0xff]
    %v614 = vld [vmem:[%s7 + $0x20] sm:$0xff]
    %v615 = vld [vmem:[%s7 + $0x28] sm:$0xff]
    %v616 = vld [vmem:[%s7 + $0x30] sm:$0xff]
    %v617 = vld [vmem:[%s7 + $0x38] sm:$0xff]
    %v618 = vld [vmem:[%s8] sm:$0xff]
    %v619 = vld [vmem:[%s8 + $0x8] sm:$0xff]
    %v620 = vld [vmem:[%s8 + $0x10] sm:$0xff]
    %v621 = vld [vmem:[%s8 + $0x18] sm:$0xff]
    %v622 = vld [vmem:[%s8 + $0x20] sm:$0xff]
    %v623 = vld [vmem:[%s8 + $0x28] sm:$0xff]
    %v624 = vld [vmem:[%s8 + $0x30] sm:$0xff]
    %v625 = vld [vmem:[%s8 + $0x38] sm:$0xff]
    %v626 = vsel %vm246, %v572, 0.0
    %v627 = vsel %vm246, %v577, 0.0
    %v628 = vadd.f32 %v626, %v627
    %v629 = vsel %vm246, %v582, 0.0
    %v630 = vadd.f32 %v628, %v629
    %v631 = vsel %vm246, %v587, 0.0
    %v632 = vadd.f32 %v630, %v631
    %v633 = vsel %vm246, %v592, 0.0
    %v634 = vadd.f32 %v632, %v633
    %v635 = vsel %vm246, %v597, 0.0
    %v636 = vadd.f32 %v634, %v635
    %v637 = vsel %vm246, %v602, 0.0
    %v638 = vadd.f32 %v636, %v637
    %v639 = vsel %vm246, %v607, 0.0
    %v640 = vadd.f32 %v638, %v639
    %v641 = vrot.slane %v640, 4
    %v642 = vadd.f32 %v640, %v641
    %v643 = vrot.slane %v642, 2
    %v644 = vadd.f32 %v642, %v643
    %v645 = vrot.slane %v644, 1
    %v646 = vadd.f32 %v644, %v645
    %v647 = vmul.f32 %v572, %v572
    %v648 = vmul.f32 %v577, %v577
    %v649 = vmul.f32 %v582, %v582
    %v650 = vmul.f32 %v587, %v587
    %v651 = vmul.f32 %v592, %v592
    %v652 = vmul.f32 %v597, %v597
    %v653 = vmul.f32 %v602, %v602
    %v654 = vmul.f32 %v607, %v607
    %v655 = vsel %vm246, %v647, 0.0
    %v656 = vsel %vm246, %v648, 0.0
    %v657 = vadd.f32 %v655, %v656
    %v658 = vsel %vm246, %v649, 0.0
    %v659 = vadd.f32 %v657, %v658
    %v660 = vsel %vm246, %v650, 0.0
    %v661 = vadd.f32 %v659, %v660
    %v662 = vsel %vm246, %v651, 0.0
    %v663 = vadd.f32 %v661, %v662
    %v664 = vsel %vm246, %v652, 0.0
    %v665 = vadd.f32 %v663, %v664
    %v666 = vsel %vm246, %v653, 0.0
    %v667 = vadd.f32 %v665, %v666
    %v668 = vsel %vm246, %v654, 0.0
    %v669 = vadd.f32 %v667, %v668
    %v670 = vrot.slane %v669, 4
    %v671 = vadd.f32 %v669, %v670
    %v672 = vrot.slane %v671, 2
    %v673 = vadd.f32 %v671, %v672
    %v674 = vrot.slane %v673, 1
    %v675 = vadd.f32 %v673, %v674
    %v676 = vmul.f32 %v646, 0.015625
    %v677 = vmul.f32 %v675, 0.015625
    %v678 = vmul.f32 %v676, %v676
    %v679 = vsub.f32 %v677, %v678
    %v680 = vmax.f32 %v679, 0.0
    %v681 = vsub.f32 %v572, %v676
    %v682 = vsub.f32 %v577, %v676
    %v683 = vsub.f32 %v582, %v676
    %v684 = vsub.f32 %v587, %v676
    %v685 = vsub.f32 %v592, %v676
    %v686 = vsub.f32 %v597, %v676
    %v687 = vsub.f32 %v602, %v676
    %v688 = vsub.f32 %v607, %v676
    %v689 = vadd.f32 %v680, 1e-05
    %v690 = vrsqrt.pop %v689
    %v691 = vmul.f32 %v681, %v690
    %v692 = vmul.f32 %v682, %v690
    %v693 = vmul.f32 %v683, %v690
    %v694 = vmul.f32 %v684, %v690
    %v695 = vmul.f32 %v685, %v690
    %v696 = vmul.f32 %v686, %v690
    %v697 = vmul.f32 %v687, %v690
    %v698 = vmul.f32 %v688, %v690
    %700 = vset.pattern.permute.xlu0 0
    %701 = vperm.xlu0 %700, %v610
    %v702 = vpop.permute.xlu0 %701
    %705 = vset.pattern.permute.xlu0 0
    %706 = vperm.xlu0 %705, %v611
    %v707 = vpop.permute.xlu0 %706
    %710 = vset.pattern.permute.xlu0 0
    %711 = vperm.xlu0 %710, %v612
    %v712 = vpop.permute.xlu0 %711
    %715 = vset.pattern.permute.xlu0 0
    %716 = vperm.xlu0 %715, %v613
    %v717 = vpop.permute.xlu0 %716
    %720 = vset.pattern.permute.xlu0 0
    %721 = vperm.xlu0 %720, %v614
    %v722 = vpop.permute.xlu0 %721
    %725 = vset.pattern.permute.xlu0 0
    %726 = vperm.xlu0 %725, %v615
    %v727 = vpop.permute.xlu0 %726
    %730 = vset.pattern.permute.xlu0 0
    %731 = vperm.xlu0 %730, %v616
    %v732 = vpop.permute.xlu0 %731
    %735 = vset.pattern.permute.xlu0 0
    %736 = vperm.xlu0 %735, %v617
    %v737 = vpop.permute.xlu0 %736
    %v739 = vmul.f32 %v691, %v702
    %v740 = vmul.f32 %v692, %v707
    %v741 = vmul.f32 %v693, %v712
    %v742 = vmul.f32 %v694, %v717
    %v743 = vmul.f32 %v695, %v722
    %v744 = vmul.f32 %v696, %v727
    %v745 = vmul.f32 %v697, %v732
    %v746 = vmul.f32 %v698, %v737
    %748 = vset.pattern.permute.xlu0 0
    %749 = vperm.xlu0 %748, %v618
    %v750 = vpop.permute.xlu0 %749
    %753 = vset.pattern.permute.xlu0 0
    %754 = vperm.xlu0 %753, %v619
    %v755 = vpop.permute.xlu0 %754
    %758 = vset.pattern.permute.xlu0 0
    %759 = vperm.xlu0 %758, %v620
    %v760 = vpop.permute.xlu0 %759
    %763 = vset.pattern.permute.xlu0 0
    %764 = vperm.xlu0 %763, %v621
    %v765 = vpop.permute.xlu0 %764
    %768 = vset.pattern.permute.xlu0 0
    %769 = vperm.xlu0 %768, %v622
    %v770 = vpop.permute.xlu0 %769
    %773 = vset.pattern.permute.xlu0 0
    %774 = vperm.xlu0 %773, %v623
    %v775 = vpop.permute.xlu0 %774
    %778 = vset.pattern.permute.xlu0 0
    %779 = vperm.xlu0 %778, %v624
    %v780 = vpop.permute.xlu0 %779
    %783 = vset.pattern.permute.xlu0 0
    %784 = vperm.xlu0 %783, %v625
    %v785 = vpop.permute.xlu0 %784
    %v787 = vadd.f32 %v739, %v750
    %v788 = vadd.f32 %v740, %v755
    %v789 = vadd.f32 %v741, %v760
    %v790 = vadd.f32 %v742, %v765
    %v791 = vadd.f32 %v743, %v770
    %v792 = vadd.f32 %v744, %v775
    %v793 = vadd.f32 %v745, %v780
    %v794 = vadd.f32 %v746, %v785
    %v795 = vmax.f32 %v787, 0.0
    %v796 = vmax.f32 %v788, 0.0
    %v797 = vmax.f32 %v789, 0.0
    %v798 = vmax.f32 %v790, 0.0
    %v799 = vmax.f32 %v791, 0.0
    %v800 = vmax.f32 %v792, 0.0
    %v801 = vmax.f32 %v793, 0.0
    %v802 = vmax.f32 %v794, 0.0
    %v803 = vld [vmem:[%s9] sm:$0xff]
    %v804 = vld [vmem:[%s9 + $0x8] sm:$0xff]
    %v805 = vld [vmem:[%s9 + $0x10] sm:$0xff]
    %v806 = vld [vmem:[%s9 + $0x18] sm:$0xff]
    %v807 = vld [vmem:[%s9 + $0x20] sm:$0xff]
    %v808 = vld [vmem:[%s9 + $0x28] sm:$0xff]
    %v809 = vld [vmem:[%s9 + $0x30] sm:$0xff]
    %v810 = vld [vmem:[%s9 + $0x38] sm:$0xff]
    %812 = vset.pattern.permute.xlu0 0
    %813 = vperm.xlu0 %812, %v803
    %v814 = vpop.permute.xlu0 %813
    %817 = vset.pattern.permute.xlu0 0
    %818 = vperm.xlu0 %817, %v804
    %v819 = vpop.permute.xlu0 %818
    %822 = vset.pattern.permute.xlu0 0
    %823 = vperm.xlu0 %822, %v805
    %v824 = vpop.permute.xlu0 %823
    %827 = vset.pattern.permute.xlu0 0
    %828 = vperm.xlu0 %827, %v806
    %v829 = vpop.permute.xlu0 %828
    %832 = vset.pattern.permute.xlu0 0
    %833 = vperm.xlu0 %832, %v807
    %v834 = vpop.permute.xlu0 %833
    %837 = vset.pattern.permute.xlu0 0
    %838 = vperm.xlu0 %837, %v808
    %v839 = vpop.permute.xlu0 %838
    %842 = vset.pattern.permute.xlu0 0
    %843 = vperm.xlu0 %842, %v809
    %v844 = vpop.permute.xlu0 %843
    %847 = vset.pattern.permute.xlu0 0
    %848 = vperm.xlu0 %847, %v810
    %v849 = vpop.permute.xlu0 %848
    %v851 = vmul.f32 %v795, %v814
    %v852 = vmul.f32 %v796, %v819
    %v853 = vmul.f32 %v797, %v824
    %v854 = vmul.f32 %v798, %v829
    %v855 = vmul.f32 %v799, %v834
    %v856 = vmul.f32 %v800, %v839
    %v857 = vmul.f32 %v801, %v844
    %v858 = vmul.f32 %v802, %v849
    %v859 = vsel %vm246, %v851, 0.0
    %v860 = vsel %vm246, %v852, 0.0
    %v861 = vadd.f32 %v859, %v860
    %v862 = vsel %vm246, %v853, 0.0
    %v863 = vadd.f32 %v861, %v862
    %v864 = vsel %vm246, %v854, 0.0
    %v865 = vadd.f32 %v863, %v864
    %v866 = vsel %vm246, %v855, 0.0
    %v867 = vadd.f32 %v865, %v866
    %v868 = vsel %vm246, %v856, 0.0
    %v869 = vadd.f32 %v867, %v868
    %v870 = vsel %vm246, %v857, 0.0
    %v871 = vadd.f32 %v869, %v870
    %v872 = vsel %vm246, %v858, 0.0
    %v873 = vadd.f32 %v871, %v872
    %v874 = vrot.slane %v873, 4
    %v875 = vadd.f32 %v873, %v874
    %v876 = vrot.slane %v875, 2
    %v877 = vadd.f32 %v875, %v876
    %v878 = vrot.slane %v877, 1
    %v879 = vadd.f32 %v877, %v878
    %v880 = vld [vmem:[#allocation2] sm:$0x1]
    %882 = vset.pattern.permute.xlu0 0
    %883 = vperm.xlu0 %882, %v880
    %v884 = vpop.permute.xlu0 %883
    %v886 = vlaneseq
    %v887 = vshrl.u32 %v886, 7
    %v888 = vsub.s32 0, %v887
    %v889 = vrot.slane %v884, %v888
    %v890 = vadd.f32 %v879, %v889
    %vm891 = vcmask 90112
    %892 = vst.msk [vmem:[#allocation3] sm:$0x1] %vm891, %v890
    // Predicated region
    $region46: #{tpu_custom_call.1} parent=1 // pred_check
      _
    $region47: #{tpu_custom_call.1} parent=1 // pred_check_branch
      %894 = sbr.rel (0) target = $region49
    $region48: #{tpu_custom_call.1} parent=1 // pred_region
      %s896 = ssub.s32 16, 16
      %897 = vsyncadd [#allocation4], %s896
      %s899 = sshll.u32 [#allocation3], 4
      %s900 = int_to_ptr.vmem [resolvable:$true] %s899
      %902 = dma.vmem_to_hbm [thread:$0]  %s900, 16, %s11, [#allocation4]
    $region49: #{tpu_custom_call.1} parent=1 // pred_fallthru
      _
    // Predicated region
    $region50: #{tpu_custom_call.1} parent=1 // pred_check
      _
    $region51: #{tpu_custom_call.1} parent=1 // pred_check_branch
      %904 = sbr.rel (0) target = $region53
    $region52: #{tpu_custom_call.1} parent=1 // pred_region
      %905 = dma.done [#allocation4], 16
    $region53: #{tpu_custom_call.1} parent=1 // pred_fallthru
      _
    %906 = vsyncpa [#allocation4], 1

</llo_original>
